<compile_context>
chip_gen: v7x
topology: tpu7x:2x2x1
jax: 0.10.0
libtpu: 0.0.40
codegen_flags: <defaults>
</compile_context>

<pallas_src>
import functools

import jax
import jax.numpy as jnp
from jax.experimental import pallas as pl
from jax.experimental.pallas import tpu as pltpu


def _vmem_capacity_bytes():
    """Per-TensorCore VMEM capacity; conservative v7x-sized fallback."""
    try:
        return int(pltpu.get_tpu_info().vmem_capacity_bytes)
    except Exception:
        return 64 * 1024 * 1024


def _has_bf16_elementwise():
    """bf16 VALU/EUP exists on v6e/v7x; v5e and older emulate via casts."""
    try:
        kind = jax.devices()[0].device_kind.lower()
    except Exception:
        return True
    return not any(t in kind for t in ("v2", "v3", "v4", "v5"))


def _attention_gate_kernel(x_ref, g_ref,
                           wt_ref, wg_ref, bsum_ref,
                           wp_ref, bp_ref,
                           o_ref, *, bf16_gate):
    """One (C, TM) pixel tile: full AttentionGate forward for that tile."""
    x = x_ref[0]                              # (C, TM), native dtype
    g = g_ref[0]                              # (2C, TM)

    # h = relu(Wt @ x + Wg @ g + (bt + bg)): f32 accumulation on the MXU,
    # single fused bias add, no separately materialized theta / phi.
    # (For very small C this is a tiny matmul; still cheap vs the HBM-bound
    #  roofline, so we keep the MXU path rather than unrolled VPU MACs.)
    acc = jnp.dot(wt_ref[...], x, preferred_element_type=jnp.float32)
    acc = acc + jnp.dot(wg_ref[...], g, preferred_element_type=jnp.float32)
    h = jnp.maximum(acc + bsum_ref[...], 0.0)                 # (C, TM) f32

    # psi = BN(Conv1x1_{C->1}(h)): VPU multiply + sublane (XLU) reduce.
    psi = jnp.sum(h * wp_ref[...], axis=0, keepdims=True) + bp_ref[...]  # (1, TM)
    rate = jax.nn.sigmoid(psi)                                # EUP, f32

    if bf16_gate:
        # v6e/v7x bf16 VALU: gate in the activation dtype (half the vregs /
        # store traffic, no f32 upcast of x).
        o_ref[0] = x * rate.astype(x.dtype)
    else:
        # v5e (no bf16 VALU) or f32 activations: keep elementwise math in f32.
        o_ref[0] = (x.astype(jnp.float32) * rate).astype(o_ref.dtype)


def _pick_tm(hw, n, c, act_itemsize, budget_bytes, *, max_tm=4096, min_steps=8):
    """Largest lane-dense pixel tile fitting the VMEM budget with enough grid
    steps for dual-TC occupancy; ragged tails handled via a cdiv grid."""
    # VMEM bytes per pixel of tile width:
    #   double-buffered x + g + out activation tiles (C + 2C + C channels)
    #   + single-buffered f32 intermediates (h ~ C f32, plus slack for the two
    #     in-flight matmul partials and the (1, TM) psi/rate rows).
    per_pixel = 2 * (4 * c) * act_itemsize + 3 * c * 4 + 8
    cap = max(128, budget_bytes // max(per_pixel, 1))
    cap = min(cap, max_tm)
    # Keep enough grid steps so both v7x TensorCores (and the software
    # pipeline) have work even when N is small.
    if n < min_steps:
        steps_per_image = -(-min_steps // n)                  # ceil
        cap = min(cap, max(128, -(-hw // steps_per_image)))   # ceil
    if hw <= cap:
        return hw                       # full-extent block: always layout-legal
    return max(128, (cap // 128) * 128)  # multiple of 128; tail block is ragged


def attention_gate_pallas(x3, g3, wt, wg, b_sum, wp, bp, *,
                          min_steps=8, max_tm=4096):
    """x3: (N, C, HW), g3: (N, 2C, HW).  Weights are BN-folded, (Cout, Cin)
    layout (wt possibly pre-cast to the activation dtype), b_sum = bt + bg of
    shape (C, 1) f32, wp transposed to (C, 1) f32, bp (1, 1) f32."""
    N, C, HW = x3.shape
    C2 = g3.shape[1]
    assert g3.shape == (N, C2, HW) and C2 == 2 * C

    act_itemsize = x3.dtype.itemsize
    vmem_cap = _vmem_capacity_bytes()
    # ~50% of per-core VMEM for activation tiles + f32 temps: ~32 MiB on v7x,
    # ~64 MiB on v5e/v6e.  The rest is double-buffer / compiler headroom.
    budget = vmem_cap // 2

    tm = _pick_tm(HW, N, C, act_itemsize, budget,
                  max_tm=max_tm, min_steps=min_steps)
    grid = (N, pl.cdiv(HW, tm))          # ragged last tile masked by Pallas

    weight_bytes = int(sum(a.size * a.dtype.itemsize
                           for a in (wt, wg, b_sum, wp, bp)))

    # VMEM accounting: double-buffered x/g/out tiles + single-buffered f32
    # intermediates (h + psi/rate + matmul-partial slack) + resident weights.
    tile_io_bytes = tm * (C + C2 + C) * act_itemsize
    interm_bytes = (3 * C + 2) * tm * 4
    vmem_limit = 2 * tile_io_bytes + interm_bytes + 2 * weight_bytes + (4 << 20)
    vmem_limit = int(min(max(vmem_limit, 8 << 20), int(0.9 * vmem_cap)))

    # Advisory cost hint for XLA's scheduler.
    M = N * HW
    flops = 6 * M * C * C + 8 * M * C
    bytes_accessed = M * (C + C2 + C) * act_itemsize + weight_bytes
    cost = pl.CostEstimate(flops=int(flops), transcendentals=int(M),
                           bytes_accessed=int(bytes_accessed))

    act_map = lambda n, m: (n, 0, m)
    w_map = lambda n, m: (0, 0)

    kernel = functools.partial(
        _attention_gate_kernel,
        bf16_gate=(x3.dtype == jnp.bfloat16 and _has_bf16_elementwise()))

    return pl.pallas_call(
        kernel,
        out_shape=jax.ShapeDtypeStruct((N, C, HW), x3.dtype),
        grid_spec=pltpu.PrefetchScalarGridSpec(
            num_scalar_prefetch=0,
            grid=grid,
            in_specs=[
                pl.BlockSpec((1, C, tm), act_map),    # x tile    (C, TM)
                pl.BlockSpec((1, C2, tm), act_map),   # g tile    (2C, TM)
                pl.BlockSpec((C, C), w_map),          # W_theta   (Cout, Cin)
                pl.BlockSpec((C, C2), w_map),         # W_phi     (Cout, Cin)
                pl.BlockSpec((C, 1), w_map),          # b_theta + b_phi
                pl.BlockSpec((C, 1), w_map),          # w_psi     (Cin, 1)
                pl.BlockSpec((1, 1), w_map),          # b_psi
            ],
            out_specs=pl.BlockSpec((1, C, tm), act_map),
        ),
        compiler_params=pltpu.CompilerParams(
            dimension_semantics=("parallel", "parallel"),
            vmem_limit_bytes=vmem_limit),
        cost_estimate=cost,
    )(x3, g3, wt, wg, b_sum, wp, bp)


def fold_bn(w, b, gamma, beta, mean, var, eps=1e-5):
    """Fold eval-mode BatchNorm into a 1x1-conv weight/bias.

    w: (Cout, Cin), b: (Cout,).  Returns (w_eff (Cout, Cin), b_eff (Cout, 1)).
    """
    scale = gamma / jnp.sqrt(var + eps)           # (Cout,)
    w_eff = w * scale[:, None]
    b_eff = (b - mean) * scale + beta
    return w_eff, b_eff[:, None]


def attention_gate_forward(x_nchw, g_nchw, params):
    """Thin wrapper: only free reshapes (NCHW -> (N, C, H*W)), no transposes."""
    N, C, H, W = x_nchw.shape
    HW = H * W
    x3 = x_nchw.reshape(N, C, HW)
    g3 = g_nchw.reshape(N, 2 * C, HW)

    wt, bt = fold_bn(params["wt"], params["bt"], *params["bn_t"])
    wg, bg = fold_bn(params["wg"], params["bg"], *params["bn_g"])
    wp, bp = fold_bn(params["wp"], params["bp"], *params["bn_p"])
    b_sum = bt + bg                               # fused theta/phi bias (C, 1)
    wp = wp.T                                     # (1, C) -> (C, 1) sublane mul

    if x_nchw.dtype == jnp.bfloat16:
        # Native bf16 MXU path (f32 accumulation in-kernel); halves weight VMEM.
        wt = wt.astype(jnp.bfloat16)
        wg = wg.astype(jnp.bfloat16)

    out3 = attention_gate_pallas(x3, g3, wt, wg, b_sum, wp, bp)
    return out3.reshape(N, C, H, W)


def attention_gate_reference(x_nchw, g_nchw, params):
    """Pure-JAX f32 reference (same eval-mode BN folding) for verification."""
    x_nchw = x_nchw.astype(jnp.float32)
    g_nchw = g_nchw.astype(jnp.float32)
    N, C, H, W = x_nchw.shape
    x3 = x_nchw.reshape(N, C, H * W)
    g3 = g_nchw.reshape(N, 2 * C, H * W)
    wt, bt = fold_bn(params["wt"], params["bt"], *params["bn_t"])
    wg, bg = fold_bn(params["wg"], params["bg"], *params["bn_g"])
    wp, bp = fold_bn(params["wp"], params["bp"], *params["bn_p"])
    theta = jnp.einsum("oc,ncm->nom", wt, x3) + bt[None]
    phi = jnp.einsum("oc,ncm->nom", wg, g3) + bg[None]
    h = jnp.maximum(theta + phi, 0.0)
    psi = jnp.einsum("oc,ncm->nom", wp, h) + bp[None]
    rate = jax.nn.sigmoid(psi)
    return (x3 * rate).reshape(N, C, H, W)


def make_params(key, C):
    """Deterministic params matching the PyTorch module's shapes.

    PyTorch Conv2d weight is (Cout, Cin, 1, 1); we store (Cout, Cin) directly.
    """
    ks = jax.random.split(key, 6)

    def bn_stats(k, ch):
        k1, k2, k3, k4 = jax.random.split(k, 4)
        gamma = 1.0 + 0.1 * jax.random.normal(k1, (ch,), jnp.float32)
        beta = 0.1 * jax.random.normal(k2, (ch,), jnp.float32)
        mean = 0.1 * jax.random.normal(k3, (ch,), jnp.float32)
        var = jnp.abs(jax.random.normal(k4, (ch,), jnp.float32)) + 0.5
        return (gamma, beta, mean, var)

    return {
        "wt": 0.3 * jax.random.normal(ks[0], (C, C), jnp.float32),
        "bt": 0.1 * jax.random.normal(ks[1], (C,), jnp.float32),
        "wg": 0.3 * jax.random.normal(ks[2], (C, 2 * C), jnp.float32),
        "bg": 0.1 * jax.random.normal(ks[3], (C,), jnp.float32),
        "wp": 0.3 * jax.random.normal(ks[4], (1, C), jnp.float32),
        "bp": 0.1 * jax.random.normal(ks[5], (1,), jnp.float32),
        "bn_t": bn_stats(jax.random.fold_in(key, 10), C),
        "bn_g": bn_stats(jax.random.fold_in(key, 11), C),
        "bn_p": bn_stats(jax.random.fold_in(key, 12), 1),
    }


if __name__ == "__main__":
    key = jax.random.PRNGKey(0)
    N, C, H, W = 2, 4, 16, 16            # in_channels = 4
    kx, kg, kp = jax.random.split(key, 3)

    x = jax.random.normal(kx, (N, C, H, W), jnp.float32)
    g = jax.random.normal(kg, (N, 2 * C, H, W), jnp.float32)
    params = make_params(kp, C)

    # f32 path: strict check against the pure-JAX reference.
    out = jax.block_until_ready(attention_gate_forward(x, g, params))
    ref = attention_gate_reference(x, g, params)
    assert out.shape == (N, C, H, W)
    assert jnp.allclose(out, ref, atol=1e-5, rtol=1e-5), "f32 mismatch vs reference"

    # bf16 path: exercises the bf16-MXU weights + (v6e/v7x) bf16 gating; loose
    # tolerance because the BN-folded weights are quantized to bf16.
    out_bf16 = jax.block_until_ready(
        attention_gate_forward(x.astype(jnp.bfloat16),
                               g.astype(jnp.bfloat16), params))
    assert out_bf16.shape == (N, C, H, W)
    assert jnp.allclose(out_bf16.astype(jnp.float32), ref, atol=5e-2, rtol=5e-2), \
        "bf16 mismatch vs reference"

    print("KERNEL_OK")
</pallas_src>

<mosaic_0001>
module attributes {stable_mosaic.version = 11 : i64} {
  func.func @_attention_gate_kernel(%arg0: i32, %arg1: i32, %arg2: memref<1x4x128xf32, #tpu.memory_space<vmem>>, %arg3: memref<1x8x128xf32, #tpu.memory_space<vmem>>, %arg4: memref<4x4xf32, #tpu.memory_space<vmem>>, %arg5: memref<4x8xf32, #tpu.memory_space<vmem>>, %arg6: memref<4x1xf32, #tpu.memory_space<vmem>>, %arg7: memref<4x1xf32, #tpu.memory_space<vmem>>, %arg8: memref<1x1xf32, #tpu.memory_space<vmem>>, %arg9: memref<1x4x128xf32, #tpu.memory_space<vmem>>) attributes {dimension_semantics = [#tpu.dimension_semantics<parallel>, #tpu.dimension_semantics<parallel>], iteration_bounds = array<i64: 2, 2>, scalar_prefetch = 0 : i64, scratch_operands = 0 : i64, tpu.core_type = #tpu.core_type<tc>, window_params = [{transform_indices = @transform_0, window_bounds = array<i64: 1, 4, 128>}, {transform_indices = @transform_1, window_bounds = array<i64: 1, 8, 128>}, {pipeline_mode = #tpu.pipeline_mode<synchronous>, transform_indices = @transform_2, window_bounds = array<i64: 4, 4>}, {pipeline_mode = #tpu.pipeline_mode<synchronous>, transform_indices = @transform_3, window_bounds = array<i64: 4, 8>}, {pipeline_mode = #tpu.pipeline_mode<synchronous>, transform_indices = @transform_4, window_bounds = array<i64: 4, 1>}, {pipeline_mode = #tpu.pipeline_mode<synchronous>, transform_indices = @transform_5, window_bounds = array<i64: 4, 1>}, {pipeline_mode = #tpu.pipeline_mode<synchronous>, transform_indices = @transform_6, window_bounds = array<i64: 1, 1>}, {transform_indices = @transform_7, window_bounds = array<i64: 1, 4, 128>}]} {
    %c0 = arith.constant 0 : index
    %c0_0 = arith.constant 0 : index
    %c0_1 = arith.constant 0 : index
    %0 = vector.load %arg2[%c0, %c0_0, %c0_1] : memref<1x4x128xf32, #tpu.memory_space<vmem>>, vector<1x4x128xf32>
    %1 = vector.shape_cast %0 : vector<1x4x128xf32> to vector<4x128xf32>
    %c0_2 = arith.constant 0 : index
    %c0_3 = arith.constant 0 : index
    %c0_4 = arith.constant 0 : index
    %2 = vector.load %arg3[%c0_2, %c0_3, %c0_4] : memref<1x8x128xf32, #tpu.memory_space<vmem>>, vector<1x8x128xf32>
    %3 = vector.shape_cast %2 : vector<1x8x128xf32> to vector<8x128xf32>
    %c0_5 = arith.constant 0 : index
    %c0_6 = arith.constant 0 : index
    %4 = vector.load %arg4[%c0_5, %c0_6] : memref<4x4xf32, #tpu.memory_space<vmem>>, vector<4x4xf32>
    %cst = arith.constant dense<0.000000e+00> : vector<4x128xf32>
    %5 = tpu.matmul %4, %1, %cst {dimension_numbers = #tpu.dot_dimension_numbers<[1], [0], [0], [1], [0, 0, 1, 1], [], []>} : vector<4x4xf32>, vector<4x128xf32>, vector<4x128xf32> -> vector<4x128xf32>
    %c0_7 = arith.constant 0 : index
    %c0_8 = arith.constant 0 : index
    %6 = vector.load %arg5[%c0_7, %c0_8] : memref<4x8xf32, #tpu.memory_space<vmem>>, vector<4x8xf32>
    %cst_9 = arith.constant dense<0.000000e+00> : vector<4x128xf32>
    %7 = tpu.matmul %6, %3, %cst_9 {dimension_numbers = #tpu.dot_dimension_numbers<[1], [0], [0], [1], [0, 0, 1, 1], [], []>} : vector<4x8xf32>, vector<8x128xf32>, vector<4x128xf32> -> vector<4x128xf32>
    %8 = arith.addf %5, %7 : vector<4x128xf32>
    %c0_10 = arith.constant 0 : index
    %c0_11 = arith.constant 0 : index
    %9 = vector.load %arg6[%c0_10, %c0_11] : memref<4x1xf32, #tpu.memory_space<vmem>>, vector<4x1xf32>
    %10 = vector.broadcast %9 : vector<4x1xf32> to vector<4x128xf32>
    %11 = arith.addf %8, %10 : vector<4x128xf32>
    %cst_12 = arith.constant 0.000000e+00 : f32
    %12 = vector.broadcast %cst_12 : f32 to vector<4x128xf32>
    %13 = arith.maximumf %11, %12 : vector<4x128xf32>
    %c0_13 = arith.constant 0 : index
    %c0_14 = arith.constant 0 : index
    %14 = vector.load %arg7[%c0_13, %c0_14] : memref<4x1xf32, #tpu.memory_space<vmem>>, vector<4x1xf32>
    %15 = vector.broadcast %14 : vector<4x1xf32> to vector<4x128xf32>
    %16 = arith.mulf %13, %15 : vector<4x128xf32>
    %cst_15 = arith.constant dense<0.000000e+00> : vector<128xf32>
    %17 = vector.multi_reduction <add>, %16, %cst_15 [0] : vector<4x128xf32> to vector<128xf32>
    %18 = vector.shape_cast %17 : vector<128xf32> to vector<1x128xf32>
    %c0_16 = arith.constant 0 : index
    %c0_17 = arith.constant 0 : index
    %19 = vector.load %arg8[%c0_16, %c0_17] : memref<1x1xf32, #tpu.memory_space<vmem>>, vector<1x1xf32>
    %20 = vector.broadcast %19 : vector<1x1xf32> to vector<1x128xf32>
    %21 = arith.addf %18, %20 : vector<1x128xf32>
    %22 = arith.negf %21 : vector<1x128xf32>
    %23 = math.exp %22 : vector<1x128xf32>
    %cst_18 = arith.constant 1.000000e+00 : f32
    %24 = vector.broadcast %cst_18 : f32 to vector<1x128xf32>
    %25 = arith.addf %24, %23 : vector<1x128xf32>
    %26 = arith.divf %24, %25 : vector<1x128xf32>
    %27 = vector.broadcast %26 : vector<1x128xf32> to vector<4x128xf32>
    %28 = arith.mulf %1, %27 : vector<4x128xf32>
    %c0_19 = arith.constant 0 : index
    %c0_20 = arith.constant 0 : index
    %c0_21 = arith.constant 0 : index
    %29 = vector.load %arg9[%c0_19, %c0_20, %c0_21] : memref<1x4x128xf32, #tpu.memory_space<vmem>>, vector<1x4x128xf32>
    %30 = vector.shape_cast %29 : vector<1x4x128xf32> to vector<4x128xf32>
    %31 = vector.shape_cast %28 : vector<4x128xf32> to vector<1x4x128xf32>
    tpu.vector_store %arg9[%c0_19, %c0_20, %c0_21], %31 {strides = array<i32>} : memref<1x4x128xf32, #tpu.memory_space<vmem>>, vector<1x4x128xf32>,
    return
  }
  func.func @transform_0(%arg0: i32, %arg1: i32) -> (i32, i32, i32) {
    %c0_i32 = arith.constant 0 : i32
    %c0_i32_0 = arith.constant 0 : i32
    return %arg0, %c0_i32, %arg1 : i32, i32, i32
  }
  func.func @transform_1(%arg0: i32, %arg1: i32) -> (i32, i32, i32) {
    %c0_i32 = arith.constant 0 : i32
    %c0_i32_0 = arith.constant 0 : i32
    return %arg0, %c0_i32, %arg1 : i32, i32, i32
  }
  func.func @transform_2(%arg0: i32, %arg1: i32) -> (i32, i32) {
    %c0_i32 = arith.constant 0 : i32
    %c0_i32_0 = arith.constant 0 : i32
    %c0_i32_1 = arith.constant 0 : i32
    return %c0_i32, %c0_i32_0 : i32, i32
  }
  func.func @transform_3(%arg0: i32, %arg1: i32) -> (i32, i32) {
    %c0_i32 = arith.constant 0 : i32
    %c0_i32_0 = arith.constant 0 : i32
    %c0_i32_1 = arith.constant 0 : i32
    return %c0_i32, %c0_i32_0 : i32, i32
  }
  func.func @transform_4(%arg0: i32, %arg1: i32) -> (i32, i32) {
    %c0_i32 = arith.constant 0 : i32
    %c0_i32_0 = arith.constant 0 : i32
    %c0_i32_1 = arith.constant 0 : i32
    return %c0_i32, %c0_i32_0 : i32, i32
  }
  func.func @transform_5(%arg0: i32, %arg1: i32) -> (i32, i32) {
    %c0_i32 = arith.constant 0 : i32
    %c0_i32_0 = arith.constant 0 : i32
    %c0_i32_1 = arith.constant 0 : i32
    return %c0_i32, %c0_i32_0 : i32, i32
  }
  func.func @transform_6(%arg0: i32, %arg1: i32) -> (i32, i32) {
    %c0_i32 = arith.constant 0 : i32
    %c0_i32_0 = arith.constant 0 : i32
    %c0_i32_1 = arith.constant 0 : i32
    return %c0_i32, %c0_i32_0 : i32, i32
  }
  func.func @transform_7(%arg0: i32, %arg1: i32) -> (i32, i32, i32) {
    %c0_i32 = arith.constant 0 : i32
    %c0_i32_0 = arith.constant 0 : i32
    return %arg0, %c0_i32, %arg1 : i32, i32, i32
  }
}

</mosaic_0001>

<llo_original>
// kernel: tpu_custom_call.1
$region0: #{tpu_custom_call.1}
  #allocation0 [shape = 'u32[]', space=smem, size = 0x4, offset = 0x4, fixed_abs, tag = 'smem constant byte address 0x4 - core index']
  #allocation1 [shape = 'u32[144,128]{1,0:T(1,128)}', space=vmem, size = 0x12000, scoped, tag = 'internal scratch']
  #allocation2 [shape = 'f32[1,1]{1,0:T(1,128)S(1)}', space=vmem, size = 0x200, scoped, tag = 'scoped memory for tpu_custom_call.1']
  %s0 = inlined_call_operand.hbm [shape: f32[2,4,256], index: 0, kind: input, shape index: {}]
  %s1 = inlined_call_operand.hbm [shape: f32[2,8,256], index: 1, kind: input, shape index: {}]
  %s2 = inlined_call_operand.vmem [shape: f32[4,4], index: 2, kind: input, shape index: {}]
  %s3 = inlined_call_operand.vmem [shape: f32[4,8], index: 3, kind: input, shape index: {}]
  %s4 = inlined_call_operand.vmem [shape: f32[4,1], index: 4, kind: input, shape index: {}]
  %s5 = inlined_call_operand.vmem [shape: f32[4,1], index: 5, kind: input, shape index: {}]
  %s6 = inlined_call_operand.<no memory space> [shape: f32[1,1], index: 6, kind: input, shape index: {}]
  %s7 = inlined_call_operand.hbm [shape: f32[2,4,256], index: 7, kind: output, shape index: {}]
  %s8 = sld [smem:[#allocation0]]
  $region69: #{tpu_custom_call.1} parent=0
    _
  %s10 = ssub.s32 1, %s8
  %s11 = scalar_select 0, %s10, %s8
  %v12 = vstv %s6
  %13 = vst [vmem:[#allocation2] sm:$0x1] %v12
  $region1: #{tpu_custom_call.1} parent=0
    #allocation3 [shape = 'u8[4096]{0}', space=vmem, size = 0x1000, scoped, tag = 'input window, operand 0']
    #allocation4 [shape = 's32[2]{0}', space=sflag, size = 0x8, scoped, tag = 'scoped memory for tpu_custom_call.1']
    #allocation5 [shape = 's32[2]{0}', space=sflag, size = 0x8, scoped, tag = 'scoped memory for tpu_custom_call.1']
    #allocation6 [shape = 'u8[8192]{0}', space=vmem, size = 0x2000, scoped, tag = 'input window, operand 1']
    #allocation7 [shape = 's32[2]{0}', space=sflag, size = 0x8, scoped, tag = 'scoped memory for tpu_custom_call.1']
    #allocation8 [shape = 'u8[4096]{0}', space=vmem, size = 0x1000, scoped, tag = 'output window, operand 0']
    %14 = vsyncpa [#allocation4], 0
    %s15 = scalar_lea.sflag [#allocation4], 1
    %16 = vsyncpa %s15, 0
    %17 = vsyncpa [#allocation7], 0
    %s18 = scalar_lea.sflag [#allocation7], 1
    %19 = vsyncpa %s18, 0
    %20 = vsyncpa [#allocation5], 0
    %s21 = scalar_lea.sflag [#allocation5], 1
    %22 = vsyncpa %s21, 0
    loop: start=0, step=1, limit=6
    $region2: #{tpu_custom_call.1} parent=1 // loop_pre_header
      _
    $region3: #{tpu_custom_call.1} parent=1 // loop_header
      %s24 = sphi 0, %s28
      %p25 = scmp.ge.s32.totalorder %s24, 6
      %s31 = sphi 0, %s43
      %s32 = sphi 0, %s39
      %s33 = sphi 0, %s31
      %s34 = sphi 0, %s32
      %s35 = sphi 0, %s33
      %s36 = sphi 0, %s34
      %s48 = sphi 0, %s50
      %s51 = sphi 0, %s48
      %s52 = sphi 0, %s51
      %s68 = sphi 0, %s52
      %s76 = sphi 0, %s78
      %s79 = sphi 0, %s76
      %s80 = sphi 0, %s79
      %s96 = sphi 0, %s80
      %s100 = sphi 0, %s100
      %s102 = sphi 0, %s100
      %s103 = sphi 0, %s102
      %s117 = sphi 0, %s103
      %s121 = sphi 0, %s121
      %s123 = sphi 0, %s121
      %s124 = sphi 0, %s123
      %s138 = sphi 0, %s124
      %s142 = sphi 0, %s142
      %s144 = sphi 0, %s142
      %s145 = sphi 0, %s144
      %s159 = sphi 0, %s145
      %s163 = sphi 0, %s163
      %s165 = sphi 0, %s163
      %s166 = sphi 0, %s165
      %s180 = sphi 0, %s166
      %s184 = sphi 0, %s184
      %s186 = sphi 0, %s184
      %s187 = sphi 0, %s186
      %s201 = sphi 0, %s187
      %s209 = sphi 0, %s211
      %s212 = sphi 0, %s209
      %s213 = sphi 0, %s212
      %s229 = sphi 0, %s213
    $region4: #{tpu_custom_call.1} parent=1 // loop_header_branch
      %27 = sbr.rel (%p25) target = $region8
    $region5: #{tpu_custom_call.1} parent=1 // loop_body
      %s29 = ssub.s32 %s24, 1
      %s30 = ssub.s32 %s24, 2
      %s37 = sadd.s32 1, %s32
      %p38 = scmp.ge.s32.totalorder %s37, 2
      %s39 = scalar_select %p38, 0, %s37
      %s40 = sadd.s32 1, %s31
      %s41 = scalar_select %p38, %s40, %s31
      %p42 = scmp.ge.s32.totalorder %s41, 2
      %s43 = scalar_select %p42, 0, %s41
      %s44 = ssub.s32 %s31, %s43
      %s45 = ssub.s32 %s32, %s39
      %s46 = sor.u32 %s44, %s45
      %p47 = scmp.eq.s32.totalorder %s46, 0
      %s49 = sadd.s32 %s48, 1
      %s50 = scalar_select %p47, %s48, %s49
      %p53 = pneg %p47
      %p54 = scmp.eq.s32.totalorder %s24, 3
      %p55 = por %p53, %p54
      %p56 = scmp.ne.s32.totalorder %s48, %s51
      %p57 = scmp.eq.s32.totalorder %s24, 0
      %p58 = por %p56, %p57
      %p59 = scmp.ne.s32.totalorder %s48, %s51
      %p60 = scmp.eq.s32.totalorder %s29, 3
      %p61 = por %p59, %p60
      %p62 = scmp.ne.s32.totalorder %s51, %s52
      %p63 = scmp.eq.s32.totalorder %s29, 0
      %p64 = por %p62, %p63
      %p65 = scmp.ne.s32.totalorder %s51, %s52
      %p66 = scmp.eq.s32.totalorder %s30, 3
      %p67 = por %p65, %p66
      %p69 = scmp.ne.s32.totalorder %s52, %s68
      %p70 = scmp.eq.s32.totalorder %s30, 0
      %p71 = por %p69, %p70
      %s72 = ssub.s32 %s31, %s43
      %s73 = ssub.s32 %s32, %s39
      %s74 = sor.u32 %s72, %s73
      %p75 = scmp.eq.s32.totalorder %s74, 0
      %s77 = sadd.s32 %s76, 1
      %s78 = scalar_select %p75, %s76, %s77
      %p81 = pneg %p75
      %p82 = scmp.eq.s32.totalorder %s24, 3
      %p83 = por %p81, %p82
      %p84 = scmp.ne.s32.totalorder %s76, %s79
      %p85 = scmp.eq.s32.totalorder %s24, 0
      %p86 = por %p84, %p85
      %p87 = scmp.ne.s32.totalorder %s76, %s79
      %p88 = scmp.eq.s32.totalorder %s29, 3
      %p89 = por %p87, %p88
      %p90 = scmp.ne.s32.totalorder %s79, %s80
      %p91 = scmp.eq.s32.totalorder %s29, 0
      %p92 = por %p90, %p91
      %p93 = scmp.ne.s32.totalorder %s79, %s80
      %p94 = scmp.eq.s32.totalorder %s30, 3
      %p95 = por %p93, %p94
      %p97 = scmp.ne.s32.totalorder %s80, %s96
      %p98 = scmp.eq.s32.totalorder %s30, 0
      %p99 = por %p97, %p98
      %s101 = sadd.s32 %s100, 1
      %p104 = scmp.eq.s32.totalorder %s24, 3
      %p105 = scmp.ne.s32.totalorder %s100, %s102
      %p106 = scmp.eq.s32.totalorder %s24, 0
      %p107 = por %p105, %p106
      %p108 = scmp.ne.s32.totalorder %s100, %s102
      %p109 = scmp.eq.s32.totalorder %s29, 3
      %p110 = por %p108, %p109
      %p111 = scmp.ne.s32.totalorder %s102, %s103
      %p112 = scmp.eq.s32.totalorder %s29, 0
      %p113 = por %p111, %p112
      %p114 = scmp.ne.s32.totalorder %s102, %s103
      %p115 = scmp.eq.s32.totalorder %s30, 3
      %p116 = por %p114, %p115
      %p118 = scmp.ne.s32.totalorder %s103, %s117
      %p119 = scmp.eq.s32.totalorder %s30, 0
      %p120 = por %p118, %p119
      %s122 = sadd.s32 %s121, 1
      %p125 = scmp.eq.s32.totalorder %s24, 3
      %p126 = scmp.ne.s32.totalorder %s121, %s123
      %p127 = scmp.eq.s32.totalorder %s24, 0
      %p128 = por %p126, %p127
      %p129 = scmp.ne.s32.totalorder %s121, %s123
      %p130 = scmp.eq.s32.totalorder %s29, 3
      %p131 = por %p129, %p130
      %p132 = scmp.ne.s32.totalorder %s123, %s124
      %p133 = scmp.eq.s32.totalorder %s29, 0
      %p134 = por %p132, %p133
      %p135 = scmp.ne.s32.totalorder %s123, %s124
      %p136 = scmp.eq.s32.totalorder %s30, 3
      %p137 = por %p135, %p136
      %p139 = scmp.ne.s32.totalorder %s124, %s138
      %p140 = scmp.eq.s32.totalorder %s30, 0
      %p141 = por %p139, %p140
      %s143 = sadd.s32 %s142, 1
      %p146 = scmp.eq.s32.totalorder %s24, 3
      %p147 = scmp.ne.s32.totalorder %s142, %s144
      %p148 = scmp.eq.s32.totalorder %s24, 0
      %p149 = por %p147, %p148
      %p150 = scmp.ne.s32.totalorder %s142, %s144
      %p151 = scmp.eq.s32.totalorder %s29, 3
      %p152 = por %p150, %p151
      %p153 = scmp.ne.s32.totalorder %s144, %s145
      %p154 = scmp.eq.s32.totalorder %s29, 0
      %p155 = por %p153, %p154
      %p156 = scmp.ne.s32.totalorder %s144, %s145
      %p157 = scmp.eq.s32.totalorder %s30, 3
      %p158 = por %p156, %p157
      %p160 = scmp.ne.s32.totalorder %s145, %s159
      %p161 = scmp.eq.s32.totalorder %s30, 0
      %p162 = por %p160, %p161
      %s164 = sadd.s32 %s163, 1
      %p167 = scmp.eq.s32.totalorder %s24, 3
      %p168 = scmp.ne.s32.totalorder %s163, %s165
      %p169 = scmp.eq.s32.totalorder %s24, 0
      %p170 = por %p168, %p169
      %p171 = scmp.ne.s32.totalorder %s163, %s165
      %p172 = scmp.eq.s32.totalorder %s29, 3
      %p173 = por %p171, %p172
      %p174 = scmp.ne.s32.totalorder %s165, %s166
      %p175 = scmp.eq.s32.totalorder %s29, 0
      %p176 = por %p174, %p175
      %p177 = scmp.ne.s32.totalorder %s165, %s166
      %p178 = scmp.eq.s32.totalorder %s30, 3
      %p179 = por %p177, %p178
      %p181 = scmp.ne.s32.totalorder %s166, %s180
      %p182 = scmp.eq.s32.totalorder %s30, 0
      %p183 = por %p181, %p182
      %s185 = sadd.s32 %s184, 1
      %p188 = scmp.eq.s32.totalorder %s24, 3
      %p189 = scmp.ne.s32.totalorder %s184, %s186
      %p190 = scmp.eq.s32.totalorder %s24, 0
      %p191 = por %p189, %p190
      %p192 = scmp.ne.s32.totalorder %s184, %s186
      %p193 = scmp.eq.s32.totalorder %s29, 3
      %p194 = por %p192, %p193
      %p195 = scmp.ne.s32.totalorder %s186, %s187
      %p196 = scmp.eq.s32.totalorder %s29, 0
      %p197 = por %p195, %p196
      %p198 = scmp.ne.s32.totalorder %s186, %s187
      %p199 = scmp.eq.s32.totalorder %s30, 3
      %p200 = por %p198, %p199
      %p202 = scmp.ne.s32.totalorder %s187, %s201
      %p203 = scmp.eq.s32.totalorder %s30, 0
      %p204 = por %p202, %p203
      %s205 = ssub.s32 %s31, %s43
      %s206 = ssub.s32 %s32, %s39
      %s207 = sor.u32 %s205, %s206
      %p208 = scmp.eq.s32.totalorder %s207, 0
      %s210 = sadd.s32 %s209, 1
      %s211 = scalar_select %p208, %s209, %s210
      %p214 = pneg %p208
      %p215 = scmp.eq.s32.totalorder %s24, 3
      %p216 = por %p214, %p215
      %p217 = scmp.ne.s32.totalorder %s209, %s212
      %p218 = scmp.eq.s32.totalorder %s24, 0
      %p219 = por %p217, %p218
      %p220 = scmp.ne.s32.totalorder %s209, %s212
      %p221 = scmp.eq.s32.totalorder %s29, 3
      %p222 = por %p220, %p221
      %p223 = scmp.ne.s32.totalorder %s212, %s213
      %p224 = scmp.eq.s32.totalorder %s29, 0
      %p225 = por %p223, %p224
      %p226 = scmp.ne.s32.totalorder %s212, %s213
      %p227 = scmp.eq.s32.totalorder %s30, 3
      %p228 = por %p226, %p227
      %p230 = scmp.ne.s32.totalorder %s213, %s229
      %p231 = scmp.eq.s32.totalorder %s30, 0
      %p232 = por %p230, %p231
      %p233 = scmp.le.s32.totalorder 1, %s24
      %p234 = scmp.lt.s32.totalorder %s24, 5
      %p235 = pnand %p233, %p234
      %p236 = pneg %p235
      // Predicated region
      $region9: #{tpu_custom_call.1} parent=5 // pred_check
        _
      $region10: #{tpu_custom_call.1} parent=5 // pred_check_branch
        %238 = sbr.rel (%p235) target = $region12
      $region11: #{tpu_custom_call.1} parent=5 // pred_region
        %s239 = ssub.s32 %s24, 1
        // Predicated region
        $region13: #{tpu_custom_call.1} parent=11 // pred_check
          %p240 = pneg %p113
        $region14: #{tpu_custom_call.1} parent=11 // pred_check_branch
          %242 = sbr.rel (%p240) target = $region16
        $region15: #{tpu_custom_call.1} parent=11 // pred_region
          _
        $region16: #{tpu_custom_call.1} parent=11 // pred_fallthru
          _
        // Predicated region
        $region17: #{tpu_custom_call.1} parent=11 // pred_check
          %p243 = pneg %p134
        $region18: #{tpu_custom_call.1} parent=11 // pred_check_branch
          %245 = sbr.rel (%p243) target = $region20
        $region19: #{tpu_custom_call.1} parent=11 // pred_region
          _
        $region20: #{tpu_custom_call.1} parent=11 // pred_fallthru
          _
        // Predicated region
        $region21: #{tpu_custom_call.1} parent=11 // pred_check
          %p246 = pneg %p155
        $region22: #{tpu_custom_call.1} parent=11 // pred_check_branch
          %248 = sbr.rel (%p246) target = $region24
        $region23: #{tpu_custom_call.1} parent=11 // pred_region
          _
        $region24: #{tpu_custom_call.1} parent=11 // pred_fallthru
          _
        // Predicated region
        $region25: #{tpu_custom_call.1} parent=11 // pred_check
          %p249 = pneg %p176
        $region26: #{tpu_custom_call.1} parent=11 // pred_check_branch
          %251 = sbr.rel (%p249) target = $region28
        $region27: #{tpu_custom_call.1} parent=11 // pred_region
          _
        $region28: #{tpu_custom_call.1} parent=11 // pred_fallthru
          _
        // Predicated region
        $region29: #{tpu_custom_call.1} parent=11 // pred_check
          %p252 = pneg %p197
        $region30: #{tpu_custom_call.1} parent=11 // pred_check_branch
          %254 = sbr.rel (%p252) target = $region32
        $region31: #{tpu_custom_call.1} parent=11 // pred_region
          _
        $region32: #{tpu_custom_call.1} parent=11 // pred_fallthru
          _
      $region12: #{tpu_custom_call.1} parent=5 // pred_fallthru
        _
      %p255 = scmp.lt.s32.totalorder %s24, 4
      // Predicated region
      $region33: #{tpu_custom_call.1} parent=5 // pred_check
        %p256 = pneg %p255
      $region34: #{tpu_custom_call.1} parent=5 // pred_check_branch
        %258 = sbr.rel (%p256) target = $region36
      $region35: #{tpu_custom_call.1} parent=5 // pred_region
        // Predicated region
        $region37: #{tpu_custom_call.1} parent=35 // pred_check
          %p259 = pneg %p58
        $region38: #{tpu_custom_call.1} parent=35 // pred_check_branch
          %261 = sbr.rel (%p259) target = $region40
        $region39: #{tpu_custom_call.1} parent=35 // pred_region
          %s262 = sand.u32 %s48, 1
          %s263 = scalar_lea.sflag [#allocation4], %s262
          %s264 = sand.u32 %s48, 1
          %s265 = smul.addr %s264, 4
          %s266 = scalar_lea.vmem [#allocation3], %s265
          %s268 = ssub.s32 64, 64
          %269 = vsyncadd %s263, %s268
          %s270 = smul.addr %s31, 2
          %s271 = sadd.s32 %s32, %s270
          %s272 = smul.addr %s271, 64
          %s273 = scalar_lea.hbm %s0, %s272
          %s275 = sshll.u32 %s266, 4
          %s276 = int_to_ptr.vmem [resolvable:$true] %s275
          %278 = dma.hbm_to_vmem [thread:$0]  %s273, 64, %s276, %s263
        $region40: #{tpu_custom_call.1} parent=35 // pred_fallthru
          _
        // Predicated region
        $region41: #{tpu_custom_call.1} parent=35 // pred_check
          %p279 = pneg %p86
        $region42: #{tpu_custom_call.1} parent=35 // pred_check_branch
          %281 = sbr.rel (%p279) target = $region44
        $region43: #{tpu_custom_call.1} parent=35 // pred_region
          %s282 = sand.u32 %s76, 1
          %s283 = scalar_lea.sflag [#allocation7], %s282
          %s284 = sand.u32 %s76, 1
          %s285 = smul.addr %s284, 8
          %s286 = scalar_lea.vmem [#allocation6], %s285
          %s288 = ssub.s32 128, 128
          %289 = vsyncadd %s283, %s288
          %s290 = smul.addr %s31, 2
          %s291 = sadd.s32 %s32, %s290
          %s292 = smul.addr %s291, 128
          %s293 = scalar_lea.hbm %s1, %s292
          %s295 = sshll.u32 %s286, 4
          %s296 = int_to_ptr.vmem [resolvable:$true] %s295
          %298 = dma.hbm_to_vmem [thread:$0]  %s293, 128, %s296, %s283
        $region44: #{tpu_custom_call.1} parent=35 // pred_fallthru
          _
      $region36: #{tpu_custom_call.1} parent=5 // pred_fallthru
        _
      %p299 = scmp.le.s32.totalorder 1, %s24
      %p300 = scmp.lt.s32.totalorder %s24, 5
      %p301 = pnand %p299, %p300
      %p302 = pneg %p301
      // Predicated region
      $region45: #{tpu_custom_call.1} parent=5 // pred_check
        _
      $region46: #{tpu_custom_call.1} parent=5 // pred_check_branch
        %304 = sbr.rel (%p301) target = $region48
      $region47: #{tpu_custom_call.1} parent=5 // pred_region
        %s305 = ssub.s32 %s24, 1
        %s306 = sand.u32 %s51, 1
        %s307 = scalar_lea.sflag [#allocation4], %s306
        %s308 = sand.u32 %s51, 1
        %s309 = smul.addr %s308, 4
        %s310 = scalar_lea.vmem [#allocation3], %s309
        // Predicated region
        $region49: #{tpu_custom_call.1} parent=47 // pred_check
          %p311 = pneg %p64
        $region50: #{tpu_custom_call.1} parent=47 // pred_check_branch
          %313 = sbr.rel (%p311) target = $region52
        $region51: #{tpu_custom_call.1} parent=47 // pred_region
          %314 = dma.done %s307, 64
        $region52: #{tpu_custom_call.1} parent=47 // pred_fallthru
          _
        %s315 = sand.u32 %s79, 1
        %s316 = scalar_lea.sflag [#allocation7], %s315
        %s317 = sand.u32 %s79, 1
        %s318 = smul.addr %s317, 8
        %s319 = scalar_lea.vmem [#allocation6], %s318
        // Predicated region
        $region53: #{tpu_custom_call.1} parent=47 // pred_check
          %p320 = pneg %p92
        $region54: #{tpu_custom_call.1} parent=47 // pred_check_branch
          %322 = sbr.rel (%p320) target = $region56
        $region55: #{tpu_custom_call.1} parent=47 // pred_region
          %323 = dma.done %s316, 128
        $region56: #{tpu_custom_call.1} parent=47 // pred_fallthru
          _
        %s324 = sand.u32 %s51, 1
        %s325 = scalar_lea.sflag [#allocation4], %s324
        %s326 = sand.u32 %s51, 1
        %s327 = smul.addr %s326, 4
        %s328 = scalar_lea.vmem [#allocation3], %s327
        %p329 = pneg %p64
        %p330 = pneg %p61
        %s331 = sand.u32 %s79, 1
        %s332 = scalar_lea.sflag [#allocation7], %s331
        %s333 = sand.u32 %s79, 1
        %s334 = smul.addr %s333, 8
        %s335 = scalar_lea.vmem [#allocation6], %s334
        %p336 = pneg %p92
        %p337 = pneg %p89
        %p338 = pneg %p113
        %p339 = pneg %p110
        %p340 = pneg %p134
        %p341 = pneg %p131
        %p342 = pneg %p155
        %p343 = pneg %p152
        %p344 = pneg %p176
        %p345 = pneg %p173
        %p346 = pneg %p197
        %p347 = pneg %p194
        %p348 = pneg %p225
        %p349 = pneg %p222
        %s350 = sand.u32 %s212, 1
        %s351 = scalar_lea.sflag [#allocation5], %s350
        %s352 = sand.u32 %s212, 1
        %s353 = smul.addr %s352, 4
        %s354 = scalar_lea.vmem [#allocation8], %s353
        %v355 = vld [vmem:[%s310] sm:$0xf]
        %v356 = vld [vmem:[%s319] sm:$0xff]
        %v357 = vld [vmem:[%s2] sm:$0xf]
        %v358 = vld [vmem:[%s3] sm:$0xf]
        %vm359 = vcmask 64512
        %v361 = vsel %vm359, %v358, 0
        %363 = vmatprep.subr.mxu0 0.0
        %364 = vmatpush1.msra.mxu0 %v356
        %365 = vmatprep.subr.mxu0 0.0
        %366 = vmatpush1.msra.mxu0 0.0
        %367 = vmatprep.subr.mxu0 0.0
        %368 = vmatpush1.msra.mxu0 0.0
        %369 = vmatprep.subr.mxu0 0.0
        %370 = vmatpush1.msra.mxu0 0.0
        %371 = vmatprep.subr.mxu0 0.0
        %372 = vmatpush1.msra.mxu0 0.0
        %373 = vmatprep.subr.mxu0 0.0
        %374 = vmatpush1.msra.mxu0 0.0
        %375 = vmatprep.subr.mxu0 0.0
        %376 = vmatpush1.msra.mxu0 0.0
        %377 = vmatprep.subr.mxu0 0.0
        %378 = vmatpush1.msra.mxu0 0.0
        %379 = vmatprep.subr.mxu0 0.0
        %380 = vmatpush1.msra.mxu0 0.0
        %381 = vmatprep.subr.mxu0 0.0
        %382 = vmatpush1.msra.mxu0 0.0
        %383 = vmatprep.subr.mxu0 0.0
        %384 = vmatpush1.msra.mxu0 0.0
        %385 = vmatprep.subr.mxu0 0.0
        %386 = vmatpush1.msra.mxu0 0.0
        %387 = vmatprep.subr.mxu0 0.0
        %388 = vmatpush1.msra.mxu0 0.0
        %389 = vmatprep.subr.mxu0 0.0
        %390 = vmatpush1.msra.mxu0 0.0
        %391 = vmatprep.subr.mxu0 0.0
        %392 = vmatpush1.msra.mxu0 0.0
        %393 = vmatprep.subr.mxu0 0.0
        %394 = vmatpush1.msra.mxu0 0.0
        %395 = vmatprep.subr.mxu0 0.0
        %396 = vmatpush1.msra.mxu0 0.0
        %397 = vmatprep.subr.mxu0 0.0
        %398 = vmatpush1.msra.mxu0 0.0
        %399 = vmatprep.subr.mxu0 0.0
        %400 = vmatpush1.msra.mxu0 0.0
        %401 = vmatprep.subr.mxu0 0.0
        %402 = vmatpush1.msra.mxu0 0.0
        %403 = vmatprep.subr.mxu0 0.0
        %404 = vmatpush1.msra.mxu0 0.0
        %405 = vmatprep.subr.mxu0 0.0
        %406 = vmatpush1.msra.mxu0 0.0
        %407 = vmatprep.subr.mxu0 0.0
        %408 = vmatpush1.msra.mxu0 0.0
        %409 = vmatprep.subr.mxu0 0.0
        %410 = vmatpush1.msra.mxu0 0.0
        %411 = vmatprep.subr.mxu0 0.0
        %412 = vmatpush1.msra.mxu0 0.0
        %413 = vmatprep.subr.mxu0 0.0
        %414 = vmatpush1.msra.mxu0 0.0
        %415 = vmatprep.subr.mxu0 0.0
        %416 = vmatpush1.msra.mxu0 0.0
        %417 = vmatprep.subr.mxu0 0.0
        %418 = vmatpush1.msra.mxu0 0.0
        %419 = vmatprep.subr.mxu0 0.0
        %420 = vmatpush1.msra.mxu0 0.0
        %421 = vmatprep.subr.mxu0 0.0
        %422 = vmatpush1.msra.mxu0 0.0
        %423 = vmatprep.subr.mxu0 0.0
        %424 = vmatpush1.msra.mxu0 0.0
        %425 = vmatprep.subr.mxu0 0.0
        %426 = vmatpush1.msra.mxu0 0.0
        %427 = vmatprep.mubr.f32.mxu0 0.0
        %428 = vmatmul.mubr.f32.gmra.mrb[0].mxu0 %v361
        %v429 = vpop.f32.mrb[0].mxu0
        %v430 = vadd.f32 0.0, %v429
        %v431 = vpop.f32.mrb[0].mxu0
        %432 = vdwg.mxu0
        %vm433 = vcmask 31744
        %v435 = vsel %vm433, %v357, 0
        %vm437 = vcmask 1043456
        %v439 = vsel %vm437, %v355, 0
        %441 = vmatprep.subr.mxu0 0.0
        %442 = vmatpush1.msra.mxu0 %v439
        %443 = vmatprep.subr.mxu0 0.0
        %444 = vmatpush1.msra.mxu0 0.0
        %445 = vmatprep.subr.mxu0 0.0
        %446 = vmatpush1.msra.mxu0 0.0
        %447 = vmatprep.subr.mxu0 0.0
        %448 = vmatpush1.msra.mxu0 0.0
        %449 = vmatprep.subr.mxu0 0.0
        %450 = vmatpush1.msra.mxu0 0.0
        %451 = vmatprep.subr.mxu0 0.0
        %452 = vmatpush1.msra.mxu0 0.0
        %453 = vmatprep.subr.mxu0 0.0
        %454 = vmatpush1.msra.mxu0 0.0
        %455 = vmatprep.subr.mxu0 0.0
        %456 = vmatpush1.msra.mxu0 0.0
        %457 = vmatprep.subr.mxu0 0.0
        %458 = vmatpush1.msra.mxu0 0.0
        %459 = vmatprep.subr.mxu0 0.0
        %460 = vmatpush1.msra.mxu0 0.0
        %461 = vmatprep.subr.mxu0 0.0
        %462 = vmatpush1.msra.mxu0 0.0
        %463 = vmatprep.subr.mxu0 0.0
        %464 = vmatpush1.msra.mxu0 0.0
        %465 = vmatprep.subr.mxu0 0.0
        %466 = vmatpush1.msra.mxu0 0.0
        %467 = vmatprep.subr.mxu0 0.0
        %468 = vmatpush1.msra.mxu0 0.0
        %469 = vmatprep.subr.mxu0 0.0
        %470 = vmatpush1.msra.mxu0 0.0
        %471 = vmatprep.subr.mxu0 0.0
        %472 = vmatpush1.msra.mxu0 0.0
        %473 = vmatprep.subr.mxu0 0.0
        %474 = vmatpush1.msra.mxu0 0.0
        %475 = vmatprep.subr.mxu0 0.0
        %476 = vmatpush1.msra.mxu0 0.0
        %477 = vmatprep.subr.mxu0 0.0
        %478 = vmatpush1.msra.mxu0 0.0
        %479 = vmatprep.subr.mxu0 0.0
        %480 = vmatpush1.msra.mxu0 0.0
        %481 = vmatprep.subr.mxu0 0.0
        %482 = vmatpush1.msra.mxu0 0.0
        %483 = vmatprep.subr.mxu0 0.0
        %484 = vmatpush1.msra.mxu0 0.0
        %485 = vmatprep.subr.mxu0 0.0
        %486 = vmatpush1.msra.mxu0 0.0
        %487 = vmatprep.subr.mxu0 0.0
        %488 = vmatpush1.msra.mxu0 0.0
        %489 = vmatprep.subr.mxu0 0.0
        %490 = vmatpush1.msra.mxu0 0.0
        %491 = vmatprep.subr.mxu0 0.0
        %492 = vmatpush1.msra.mxu0 0.0
        %493 = vmatprep.subr.mxu0 0.0
        %494 = vmatpush1.msra.mxu0 0.0
        %495 = vmatprep.subr.mxu0 0.0
        %496 = vmatpush1.msra.mxu0 0.0
        %497 = vmatprep.subr.mxu0 0.0
        %498 = vmatpush1.msra.mxu0 0.0
        %499 = vmatprep.subr.mxu0 0.0
        %500 = vmatpush1.msra.mxu0 0.0
        %501 = vmatprep.subr.mxu0 0.0
        %502 = vmatpush1.msra.mxu0 0.0
        %503 = vmatprep.subr.mxu0 0.0
        %504 = vmatpush1.msra.mxu0 0.0
        %505 = vmatprep.mubr.f32.mxu0 0.0
        %506 = vmatmul.mubr.f32.gmra.mrb[0].mxu0 %v435
        %v507 = vpop.f32.mrb[0].mxu0
        %v508 = vadd.f32 %v430, %v507
        %v509 = vpop.f32.mrb[0].mxu0
        %510 = vdwg.mxu0
        %v511 = vld [vmem:[%s4] sm:$0xf]
        %513 = vset.pattern.permute.xlu0 0
        %514 = vperm.xlu0 %513, %v511
        %v515 = vpop.permute.xlu0 %514
        %v517 = vadd.f32 %v508, %v515
        %v518 = vmax.f32 %v517, 0.0
        %v519 = vld [vmem:[%s5] sm:$0xf]
        %521 = vset.pattern.permute.xlu0 0
        %522 = vperm.xlu0 %521, %v519
        %v523 = vpop.permute.xlu0 %522
        %v525 = vmul.f32 %v518, %v523
        %v526 = vsel %vm437, %v525, 0.0
        %v527 = vrot.slane %v526, 4
        %v528 = vadd.f32 %v526, %v527
        %v529 = vrot.slane %v528, 2
        %v530 = vadd.f32 %v528, %v529
        %v531 = vrot.slane %v530, 1
        %v532 = vadd.f32 %v530, %v531
        %v533 = vld [vmem:[#allocation2] sm:$0x1]
        %535 = vset.pattern.permute.xlu0 0
        %536 = vperm.xlu0 %535, %v533
        %v537 = vpop.permute.xlu0 %536
        %v539 = vlaneseq
        %v540 = vshrl.u32 %v539, 7
        %v541 = vsub.s32 0, %v540
        %v542 = vrot.slane %v537, %v541
        %v543 = vadd.f32 %v532, %v542
        %v544 = vxor.u32 %v543, 2147483648
        %v545 = vmul.f32 %v544, 1.442695
        %v546 = vpow.pop %v545
        %v547 = vadd.f32 %v546, 1.0
        %v548 = vrcp.pop %v547
        %v549 = vmul.f32 1.0, %v548
        %v550 = vmul.f32 %v355, %v549
        %551 = vst [vmem:[%s354] sm:$0xf] %v550
        %s552 = sand.u32 %s212, 1
        %s553 = scalar_lea.sflag [#allocation5], %s552
        %s554 = sand.u32 %s212, 1
        %s555 = smul.addr %s554, 4
        %s556 = scalar_lea.vmem [#allocation8], %s555
        // Predicated region
        $region57: #{tpu_custom_call.1} parent=47 // pred_check
          %p557 = pneg %p222
        $region58: #{tpu_custom_call.1} parent=47 // pred_check_branch
          %559 = sbr.rel (%p557) target = $region60
        $region59: #{tpu_custom_call.1} parent=47 // pred_region
          %s561 = ssub.s32 64, 64
          %562 = vsyncadd %s553, %s561
          %s563 = smul.addr %s33, 2
          %s564 = sadd.s32 %s34, %s563
          %s565 = smul.addr %s564, 64
          %s566 = scalar_lea.hbm %s7, %s565
          %s568 = sshll.u32 %s556, 4
          %s569 = int_to_ptr.vmem [resolvable:$true] %s568
          %571 = dma.vmem_to_hbm [thread:$0]  %s569, 64, %s566, %s553
        $region60: #{tpu_custom_call.1} parent=47 // pred_fallthru
          _
      $region48: #{tpu_custom_call.1} parent=5 // pred_fallthru
        _
      %p572 = scmp.le.s32.totalorder 2, %s24
      // Predicated region
      $region61: #{tpu_custom_call.1} parent=5 // pred_check
        %p573 = pneg %p572
      $region62: #{tpu_custom_call.1} parent=5 // pred_check_branch
        %575 = sbr.rel (%p573) target = $region64
      $region63: #{tpu_custom_call.1} parent=5 // pred_region
        %s576 = ssub.s32 %s24, 2
        // Predicated region
        $region65: #{tpu_custom_call.1} parent=63 // pred_check
          %p577 = pneg %p228
        $region66: #{tpu_custom_call.1} parent=63 // pred_check_branch
          %579 = sbr.rel (%p577) target = $region68
        $region67: #{tpu_custom_call.1} parent=63 // pred_region
          %s580 = sand.u32 %s213, 1
          %s581 = scalar_lea.sflag [#allocation5], %s580
          %s582 = sand.u32 %s213, 1
          %s583 = smul.addr %s582, 4
          %s584 = scalar_lea.vmem [#allocation8], %s583
          %585 = dma.done %s581, 64
        $region68: #{tpu_custom_call.1} parent=63 // pred_fallthru
          _
      $region64: #{tpu_custom_call.1} parent=5 // pred_fallthru
        _
    $region6: #{tpu_custom_call.1} parent=1 // loop_footer
      %s28 = sadd.s32 1, %s24
    $region7: #{tpu_custom_call.1} parent=1 // loop_footer_branch
      %23 = sbr.rel target = $region3
    $region8: #{tpu_custom_call.1} parent=1 // loop_exit
      _
    %586 = vsyncpa [#allocation4], 1
    %s587 = scalar_lea.sflag [#allocation4], 1
    %588 = vsyncpa %s587, 1
    %589 = vsyncpa [#allocation7], 1
    %s590 = scalar_lea.sflag [#allocation7], 1
    %591 = vsyncpa %s590, 1
    %592 = vsyncpa [#allocation5], 1
    %s593 = scalar_lea.sflag [#allocation5], 1
    %594 = vsyncpa %s593, 1

</llo_original>
